<compile_context>
chip_gen: v6e
topology: v6e:2x2x1
jax: 0.10.0
libtpu: 0.0.40
codegen_flags: <defaults>
</compile_context>

<pallas_src>
import jax
import jax.numpy as jnp
from jax.experimental import pallas as pl
from jax.experimental.pallas import tpu as pltpu

_LANES = 128
_SUBLANES = 8
_ROW_ALIGN = 16          # covers f32 (8,128) and bf16 (16,128) sublane packing
_CHUNK_ROWS = 256        # inner-loop chunk: (256,128) f32 temps = 128 KiB


def _round_up(x, m):
    return ((x + m - 1) // m) * m


def _device_defaults():
    """(tile_rows, core_split) tuned per TPU generation."""
    try:
        kind = jax.devices()[0].device_kind.lower()
    except Exception:
        kind = ""
    if "v7" in kind:
        # ~3.2 TB/s HBM per TC: 4 MiB blocks + split across the 2 TensorCores.
        return 8192, 2
    # v5e / v6e: single TensorCore, 2 MiB f32 blocks (~90% of HBM roofline).
    return 4096, 1


def _bce_chunk(p, t):
    """BCE log-likelihood contribution t*log(p) + (1-t)*log(1-p) per element.

    NOTE: the -100 clamp is applied to the logs BEFORE multiplying by t
    (matching torch.nn.BCELoss); this also makes zero-padded elements
    (p=0, t=0) contribute exactly 0.  Do not reorder the clamp.
    """
    p = p.astype(jnp.float32)
    t = t.astype(jnp.float32)
    log_p = jnp.maximum(jnp.log(p), -100.0)
    log_1mp = jnp.maximum(jnp.log(1.0 - p), -100.0)
    # == t*log_p + (1-t)*log_1mp, one fewer mul/sub per element.
    return log_1mp + t * (log_p - log_1mp)


def _vae_bce_kernel(meta_ref, inp_ref, tgt_ref, out_ref):
    c = pl.program_id(0)                 # TensorCore-split axis ("parallel")
    i = pl.program_id(1)                 # streaming reduction axis ("arbitrary")
    steps = pl.num_programs(1)

    tr = inp_ref.shape[0]                                      # static
    chunk = _CHUNK_ROWS if tr % _CHUNK_ROWS == 0 else tr       # static
    n_chunks = tr // chunk                                     # static

    @pl.when(i == 0)
    def _init():
        out_ref[...] = jnp.zeros_like(out_ref)

    blk = c * steps + i                  # logical (unclamped) block index
    nrows = meta_ref[0]                  # number of valid 128-lane rows
    # Block fully in-bounds -> skip all masking work in the hot path.
    is_full = (blk + 1) * tr <= nrows

    def accumulate(masked):
        def body(j, acc):
            off = pl.multiple_of(j * chunk, chunk)
            contrib = _bce_chunk(inp_ref[pl.ds(off, chunk), :],
                                 tgt_ref[pl.ds(off, chunk), :])
            if masked:
                row = (blk * tr + off +
                       jax.lax.broadcasted_iota(jnp.int32, contrib.shape, 0))
                # select (not multiply): out-of-bounds rows may hold garbage
                # (NaN/Inf) from Pallas block padding or a clamped re-read.
                contrib = jnp.where(row < nrows, contrib, 0.0)
            # VPU-only sublane-group reduction into a vreg-shaped accumulator;
            # the cross-lane (XLU) reduce happens once, in the wrapper.
            return acc + contrib.reshape(-1, _SUBLANES, _LANES).sum(axis=0)

        out_ref[...] += jax.lax.fori_loop(
            0, n_chunks, body, jnp.zeros((_SUBLANES, _LANES), jnp.float32))

    @pl.when(is_full)
    def _fast():
        accumulate(masked=False)

    @pl.when(jnp.logical_not(is_full))
    def _edge():
        accumulate(masked=True)


def vae_loss(inputs, targets, mu, logvar, *, tile_rows=None, core_split=None):
    """BCE(inputs, targets, reduction='sum') + KLD(mu, logvar)."""
    d_tr, d_cs = _device_defaults()
    tile_rows = d_tr if tile_rows is None else int(tile_rows)
    core_split = d_cs if core_split is None else max(1, int(core_split))

    flat_i = inputs.reshape(-1)
    flat_t = targets.reshape(-1)
    n = int(flat_i.shape[0])

    # Pad only up to one (_ROW_ALIGN x 128) slab (<= 2047 zeros), never to
    # block granularity.  Zero padding contributes exactly 0 (see _bce_chunk).
    n_pad = _round_up(max(n, 1), _ROW_ALIGN * _LANES)
    if n_pad != n:
        flat_i = jnp.pad(flat_i, (0, n_pad - n))
        flat_t = jnp.pad(flat_t, (0, n_pad - n))
    rows = n_pad // _LANES

    # Effective tile: never bigger than one core's share of the rows.
    tr = max(_ROW_ALIGN,
             min(_round_up(tile_rows, _ROW_ALIGN),
                 _round_up(pl.cdiv(rows, core_split), _ROW_ALIGN)))
    nblocks = pl.cdiv(rows, tr)
    steps = pl.cdiv(nblocks, core_split)

    inp2d = flat_i.reshape(rows, _LANES)
    tgt2d = flat_t.reshape(rows, _LANES)
    # [valid rows, last valid block index] for in-kernel masking / index clamp.
    meta = jnp.array([rows, nblocks - 1], dtype=jnp.int32)

    itemsize = jnp.dtype(inputs.dtype).itemsize
    block_bytes = tr * _LANES * itemsize
    # 2 inputs x 2 pipeline buffers + headroom for the small chunked temps.
    vmem_limit = int(4 * block_bytes) + (12 << 20)

    cost = pl.CostEstimate(
        flops=8 * n_pad,
        transcendentals=2 * n_pad,
        bytes_accessed=2 * n_pad * itemsize + core_split * _SUBLANES * _LANES * 4,
    )

    def in_map(c, i, meta_ref):
        # Clamp so a core whose block range overhangs nblocks just re-reads the
        # last valid block; the kernel masks that contribution to zero.
        return (jnp.minimum(c * steps + i, meta_ref[1]), 0)

    out = pl.pallas_call(
        _vae_bce_kernel,
        out_shape=jax.ShapeDtypeStruct((core_split * _SUBLANES, _LANES),
                                       jnp.float32),
        grid_spec=pltpu.PrefetchScalarGridSpec(
            num_scalar_prefetch=1,
            grid=(core_split, steps),
            in_specs=[
                pl.BlockSpec((tr, _LANES), in_map),
                pl.BlockSpec((tr, _LANES), in_map),
            ],
            out_specs=pl.BlockSpec((_SUBLANES, _LANES),
                                   lambda c, i, meta_ref: (c, 0)),
        ),
        # TODO(synk): verify on v7x (xprof) that the leading "parallel" axis
        # actually shards across both TensorCores; if not, switch to
        # pltpu.CORE_PARALLEL.
        compiler_params=pltpu.CompilerParams(
            dimension_semantics=("parallel", "arbitrary"),
            vmem_limit_bytes=vmem_limit),
        cost_estimate=cost,
    )(meta, inp2d, tgt2d)

    bce = -jnp.sum(out)

    # KLD is tiny relative to the BCE stream -> plain XLA, outside the kernel.
    mu32 = mu.astype(jnp.float32)
    lv32 = logvar.astype(jnp.float32)
    kld = -0.5 * jnp.sum(1.0 + lv32 - mu32 * mu32 - jnp.exp(lv32))
    return bce + kld


def vae_loss_ref(inputs, targets, mu, logvar):
    p = inputs.astype(jnp.float32)
    t = targets.astype(jnp.float32)
    log_p = jnp.maximum(jnp.log(p), -100.0)
    log_1mp = jnp.maximum(jnp.log(1.0 - p), -100.0)
    bce = -jnp.sum(t * log_p + (1.0 - t) * log_1mp)
    kld = -0.5 * jnp.sum(1.0 + logvar - mu * mu - jnp.exp(logvar))
    return bce + kld


if __name__ == "__main__":
    key = jax.random.PRNGKey(0)
    k1, k2, k3, k4, k5, k6, k7, k8 = jax.random.split(key, 8)

    # (a) Small NCHW probabilities (2*4*16*16 = 2048 elems = 16 lane-rows).
    N, C, H, W, Z = 2, 4, 16, 16, 32
    inputs = jax.random.uniform(k1, (N, C, H, W), jnp.float32,
                                minval=1e-4, maxval=1.0 - 1e-4)
    targets = jax.random.uniform(k2, (N, C, H, W), jnp.float32)
    mu = jax.random.normal(k3, (N, Z), jnp.float32)
    logvar = 0.1 * jax.random.normal(k4, (N, Z), jnp.float32)
    ref = vae_loss_ref(inputs, targets, mu, logvar)

    got_default = jax.block_until_ready(vae_loss(inputs, targets, mu, logvar))
    # Forced 2-way split: exercises the clamped / fully-masked overhang block
    # and the ("parallel", "arbitrary") grid even on single-TC chips.
    got_split = jax.block_until_ready(
        vae_loss(inputs, targets, mu, logvar, tile_rows=16, core_split=2))
    for got in (got_default, got_split):
        assert jnp.allclose(got, ref, rtol=1e-4, atol=1e-2), (got, ref)

    # (b) Ragged case: 2*3*31*31 = 5766 elems (not a multiple of 128) with a
    # small tile so the last block is partially out-of-bounds and masked.
    inputs_b = jax.random.uniform(k5, (2, 3, 31, 31), jnp.float32,
                                  minval=1e-4, maxval=1.0 - 1e-4)
    targets_b = (jax.random.uniform(k6, (2, 3, 31, 31)) > 0.5).astype(jnp.float32)
    ref_b = vae_loss_ref(inputs_b, targets_b, mu, logvar)
    got_b = jax.block_until_ready(
        vae_loss(inputs_b, targets_b, mu, logvar, tile_rows=32, core_split=1))
    assert jnp.allclose(got_b, ref_b, rtol=1e-4, atol=1e-2), (got_b, ref_b)

    # (c) Larger aligned case (16*4*64*64 = 262144 elems = 2048 rows): the
    # default device-tuned path, exercising the chunked inner loop on a real
    # multi-chunk tile.
    inputs_c = jax.random.uniform(k7, (16, 4, 64, 64), jnp.float32,
                                  minval=1e-4, maxval=1.0 - 1e-4)
    targets_c = jax.random.uniform(k8, (16, 4, 64, 64), jnp.float32)
    ref_c = vae_loss_ref(inputs_c, targets_c, mu, logvar)
    got_c = jax.block_until_ready(vae_loss(inputs_c, targets_c, mu, logvar))
    assert jnp.allclose(got_c, ref_c, rtol=1e-4, atol=1e-2), (got_c, ref_c)

    print("KERNEL_OK")
</pallas_src>

<mosaic_0001>
module attributes {stable_mosaic.version = 11 : i64} {
  func.func @_vae_bce_kernel(%arg0: i32, %arg1: i32, %arg2: memref<2xi32, #tpu.memory_space<smem>>, %arg3: memref<16x128xf32, #tpu.memory_space<vmem>>, %arg4: memref<16x128xf32, #tpu.memory_space<vmem>>, %arg5: memref<8x128xf32, #tpu.memory_space<vmem>>) attributes {dimension_semantics = [#tpu.dimension_semantics<parallel>, #tpu.dimension_semantics<arbitrary>], iteration_bounds = array<i64: 1, 1>, scalar_prefetch = 1 : i64, scratch_operands = 0 : i64, tpu.core_type = #tpu.core_type<tc>, window_params = [{transform_indices = @transform_0, window_bounds = array<i64: 16, 128>}, {transform_indices = @transform_1, window_bounds = array<i64: 16, 128>}, {transform_indices = @transform_2, window_bounds = array<i64: 8, 128>}]} {
    %c0_i32 = arith.constant 0 : i32
    %0 = arith.cmpi eq, %arg1, %c0_i32 : i32
    %1 = arith.extui %0 : i1 to i32
    %c0_i32_0 = arith.constant 0 : i32
    %2 = arith.cmpi ne, %1, %c0_i32_0 : i32
    scf.if %2 {
      %cst = arith.constant 0.000000e+00 : f32
      %14 = vector.broadcast %cst : f32 to vector<8x128xf32>
      %c0_4 = arith.constant 0 : index
      %c0_5 = arith.constant 0 : index
      %15 = vector.load %arg5[%c0_4, %c0_5] : memref<8x128xf32, #tpu.memory_space<vmem>>, vector<8x128xf32>
      tpu.vector_store %arg5[%c0_4, %c0_5], %14 {strides = array<i32>} : memref<8x128xf32, #tpu.memory_space<vmem>>, vector<8x128xf32>,
    } else {
    }
    %c1_i32 = arith.constant 1 : i32
    %3 = arith.muli %arg0, %c1_i32 : i32
    %4 = arith.addi %3, %arg1 : i32
    %c0 = arith.constant 0 : index
    %5 = memref.load %arg2[%c0] : memref<2xi32, #tpu.memory_space<smem>>
    %c1_i32_1 = arith.constant 1 : i32
    %6 = arith.addi %4, %c1_i32_1 : i32
    %c16_i32 = arith.constant 16 : i32
    %7 = arith.muli %6, %c16_i32 : i32
    %8 = arith.cmpi sle, %7, %5 : i32
    %9 = arith.extui %8 : i1 to i32
    %c0_i32_2 = arith.constant 0 : i32
    %10 = arith.cmpi ne, %9, %c0_i32_2 : i32
    scf.if %10 {
      %c0_4 = arith.constant 0 : index
      %c0_5 = arith.constant 0 : index
      %14 = vector.load %arg5[%c0_4, %c0_5] : memref<8x128xf32, #tpu.memory_space<vmem>>, vector<8x128xf32>
      %cst = arith.constant 0.000000e+00 : f32
      %15 = vector.broadcast %cst : f32 to vector<8x128xf32>
      %c0_i32_6 = arith.constant 0 : i32
      %c16_i32_7 = arith.constant 16 : i32
      %16 = arith.muli %c0_i32_6, %c16_i32_7 : i32
      %17 = tpu.assume_multiple %16, 16 : i32
      %18 = arith.index_cast %17 : i32 to index
      %c0_8 = arith.constant 0 : index
      %19 = vector.load %arg3[%18, %c0_8] : memref<16x128xf32, #tpu.memory_space<vmem>>, vector<16x128xf32>
      %20 = arith.index_cast %17 : i32 to index
      %c0_9 = arith.constant 0 : index
      %21 = vector.load %arg4[%20, %c0_9] : memref<16x128xf32, #tpu.memory_space<vmem>>, vector<16x128xf32>
      %22 = math.log %19 : vector<16x128xf32>
      %cst_10 = arith.constant -1.000000e+02 : f32
      %23 = vector.broadcast %cst_10 : f32 to vector<16x128xf32>
      %24 = arith.maximumf %22, %23 : vector<16x128xf32>
      %cst_11 = arith.constant 1.000000e+00 : f32
      %25 = vector.broadcast %cst_11 : f32 to vector<16x128xf32>
      %26 = arith.subf %25, %19 : vector<16x128xf32>
      %27 = math.log %26 : vector<16x128xf32>
      %cst_12 = arith.constant -1.000000e+02 : f32
      %28 = vector.broadcast %cst_12 : f32 to vector<16x128xf32>
      %29 = arith.maximumf %27, %28 : vector<16x128xf32>
      %30 = arith.subf %24, %29 : vector<16x128xf32>
      %31 = arith.mulf %21, %30 : vector<16x128xf32>
      %32 = arith.addf %29, %31 : vector<16x128xf32>
      %33 = vector.shape_cast %32 : vector<16x128xf32> to vector<2x8x128xf32>
      %cst_13 = arith.constant dense<0.000000e+00> : vector<8x128xf32>
      %34 = vector.multi_reduction <add>, %33, %cst_13 [0] : vector<2x8x128xf32> to vector<8x128xf32>
      %35 = arith.addf %15, %34 : vector<8x128xf32>
      %c1_i32_14 = arith.constant 1 : i32
      %36 = arith.addf %14, %35 : vector<8x128xf32>
      %c0_15 = arith.constant 0 : index
      %c0_16 = arith.constant 0 : index
      %37 = vector.load %arg5[%c0_15, %c0_16] : memref<8x128xf32, #tpu.memory_space<vmem>>, vector<8x128xf32>
      tpu.vector_store %arg5[%c0_15, %c0_16], %36 {strides = array<i32>} : memref<8x128xf32, #tpu.memory_space<vmem>>, vector<8x128xf32>,
    } else {
    }
    %true = arith.constant true
    %11 = arith.xori %8, %true : i1
    %12 = arith.extui %11 : i1 to i32
    %c0_i32_3 = arith.constant 0 : i32
    %13 = arith.cmpi ne, %12, %c0_i32_3 : i32
    scf.if %13 {
      %c0_4 = arith.constant 0 : index
      %c0_5 = arith.constant 0 : index
      %14 = vector.load %arg5[%c0_4, %c0_5] : memref<8x128xf32, #tpu.memory_space<vmem>>, vector<8x128xf32>
      %cst = arith.constant 0.000000e+00 : f32
      %15 = vector.broadcast %cst : f32 to vector<8x128xf32>
      %c0_i32_6 = arith.constant 0 : i32
      %c16_i32_7 = arith.constant 16 : i32
      %16 = arith.muli %c0_i32_6, %c16_i32_7 : i32
      %17 = tpu.assume_multiple %16, 16 : i32
      %18 = arith.index_cast %17 : i32 to index
      %c0_8 = arith.constant 0 : index
      %19 = vector.load %arg3[%18, %c0_8] : memref<16x128xf32, #tpu.memory_space<vmem>>, vector<16x128xf32>
      %20 = arith.index_cast %17 : i32 to index
      %c0_9 = arith.constant 0 : index
      %21 = vector.load %arg4[%20, %c0_9] : memref<16x128xf32, #tpu.memory_space<vmem>>, vector<16x128xf32>
      %22 = math.log %19 : vector<16x128xf32>
      %cst_10 = arith.constant -1.000000e+02 : f32
      %23 = vector.broadcast %cst_10 : f32 to vector<16x128xf32>
      %24 = arith.maximumf %22, %23 : vector<16x128xf32>
      %cst_11 = arith.constant 1.000000e+00 : f32
      %25 = vector.broadcast %cst_11 : f32 to vector<16x128xf32>
      %26 = arith.subf %25, %19 : vector<16x128xf32>
      %27 = math.log %26 : vector<16x128xf32>
      %cst_12 = arith.constant -1.000000e+02 : f32
      %28 = vector.broadcast %cst_12 : f32 to vector<16x128xf32>
      %29 = arith.maximumf %27, %28 : vector<16x128xf32>
      %30 = arith.subf %24, %29 : vector<16x128xf32>
      %31 = arith.mulf %21, %30 : vector<16x128xf32>
      %32 = arith.addf %29, %31 : vector<16x128xf32>
      %c16_i32_13 = arith.constant 16 : i32
      %33 = arith.muli %4, %c16_i32_13 : i32
      %34 = arith.addi %33, %17 : i32
      %35 = tpu.iota {dimensions = array<i32: 0>} : vector<16x128xi32>
      %36 = vector.broadcast %34 : i32 to vector<16x128xi32>
      %37 = arith.addi %36, %35 : vector<16x128xi32>
      %38 = vector.broadcast %5 : i32 to vector<16x128xi32>
      %39 = arith.cmpi slt, %37, %38 : vector<16x128xi32>
      %cst_14 = arith.constant 0.000000e+00 : f32
      %40 = vector.broadcast %cst_14 : f32 to vector<16x128xf32>
      %41 = arith.select %39, %32, %40 : vector<16x128xi1>, vector<16x128xf32>
      %42 = vector.shape_cast %41 : vector<16x128xf32> to vector<2x8x128xf32>
      %cst_15 = arith.constant dense<0.000000e+00> : vector<8x128xf32>
      %43 = vector.multi_reduction <add>, %42, %cst_15 [0] : vector<2x8x128xf32> to vector<8x128xf32>
      %44 = arith.addf %15, %43 : vector<8x128xf32>
      %c1_i32_16 = arith.constant 1 : i32
      %45 = arith.addf %14, %44 : vector<8x128xf32>
      %c0_17 = arith.constant 0 : index
      %c0_18 = arith.constant 0 : index
      %46 = vector.load %arg5[%c0_17, %c0_18] : memref<8x128xf32, #tpu.memory_space<vmem>>, vector<8x128xf32>
      tpu.vector_store %arg5[%c0_17, %c0_18], %45 {strides = array<i32>} : memref<8x128xf32, #tpu.memory_space<vmem>>, vector<8x128xf32>,
    } else {
    }
    return
  }
  func.func @transform_0(%arg0: i32, %arg1: i32, %arg2: memref<2xi32, #tpu.memory_space<smem>>) -> (i32, i32) {
    %c1_i32 = arith.constant 1 : i32
    %0 = arith.muli %arg0, %c1_i32 : i32
    %1 = arith.addi %0, %arg1 : i32
    %c1 = arith.constant 1 : index
    %2 = memref.load %arg2[%c1] : memref<2xi32, #tpu.memory_space<smem>>
    %3 = arith.minsi %1, %2 : i32
    %c0_i32 = arith.constant 0 : i32
    %c0_i32_0 = arith.constant 0 : i32
    return %3, %c0_i32 : i32, i32
  }
  func.func @transform_1(%arg0: i32, %arg1: i32, %arg2: memref<2xi32, #tpu.memory_space<smem>>) -> (i32, i32) {
    %c1_i32 = arith.constant 1 : i32
    %0 = arith.muli %arg0, %c1_i32 : i32
    %1 = arith.addi %0, %arg1 : i32
    %c1 = arith.constant 1 : index
    %2 = memref.load %arg2[%c1] : memref<2xi32, #tpu.memory_space<smem>>
    %3 = arith.minsi %1, %2 : i32
    %c0_i32 = arith.constant 0 : i32
    %c0_i32_0 = arith.constant 0 : i32
    return %3, %c0_i32 : i32, i32
  }
  func.func @transform_2(%arg0: i32, %arg1: i32, %arg2: memref<2xi32, #tpu.memory_space<smem>>) -> (i32, i32) {
    %c0_i32 = arith.constant 0 : i32
    %c0_i32_0 = arith.constant 0 : i32
    return %arg0, %c0_i32 : i32, i32
  }
}

</mosaic_0001>

<llo_original>
// kernel: tpu_custom_call.1
$region0: #{tpu_custom_call.1}
  #allocation0 [shape = 'u32[]', space=smem, size = 0x4, offset = 0x4, fixed_abs, tag = 'smem constant byte address 0x4 - core index']
  #allocation1 [shape = 'u32[144,128]{1,0:T(1,128)}', space=vmem, size = 0x12000, scoped, tag = 'internal scratch']
  #allocation2 [shape = 's32[1]{0}', space=sflag, size = 0x4, scoped, tag = 'scoped memory for tpu_custom_call.1']
  #allocation3 [shape = 'u8[512]{0}', space=smem, size = 0x200, scoped, tag = 'prefetched SMEM operand 0']
  %s0 = inlined_call_operand.hbm [shape: s32[2], index: 0, kind: input, shape index: {}]
  %s1 = inlined_call_operand.hbm [shape: f32[16,128], index: 1, kind: input, shape index: {}]
  %s2 = inlined_call_operand.hbm [shape: f32[16,128], index: 2, kind: input, shape index: {}]
  %s3 = inlined_call_operand.hbm [shape: f32[8,128], index: 3, kind: output, shape index: {}]
  %s4 = sld [smem:[#allocation0]]
  $region38: #{tpu_custom_call.1} parent=0
    _
  %s6 = ssub.s32 1, %s4
  %s7 = scalar_select 0, %s6, %s4
  %9 = dma.hbm_to_smem %s0, 16, [#allocation3], [#allocation2]
  %10 = dma.done [#allocation2], 16
  %11 = sfence
  $region1: #{tpu_custom_call.1} parent=0
    #allocation4 [shape = 'u8[8192]{0}', space=vmem, size = 0x2000, scoped, tag = 'input window, operand 1, single buffered']
    #allocation5 [shape = 's32[1]{0}', space=sflag, size = 0x4, scoped, tag = 'scoped memory for tpu_custom_call.1']
    #allocation6 [shape = 's32[1]{0}', space=sflag, size = 0x4, scoped, tag = 'scoped memory for tpu_custom_call.1']
    #allocation7 [shape = 'u8[8192]{0}', space=vmem, size = 0x2000, scoped, tag = 'input window, operand 2, single buffered']
    #allocation8 [shape = 's32[1]{0}', space=sflag, size = 0x4, scoped, tag = 'scoped memory for tpu_custom_call.1']
    #allocation9 [shape = 'u8[4096]{0}', space=vmem, size = 0x1000, scoped, tag = 'output window, operand 0, single buffered']
    %12 = vsyncpa [#allocation5], 0
    %13 = vsyncpa [#allocation8], 0
    %14 = vsyncpa [#allocation6], 0
    // Predicated region
    $region2: #{tpu_custom_call.1} parent=1 // pred_check
      _
    $region3: #{tpu_custom_call.1} parent=1 // pred_check_branch
      %16 = sbr.rel (0) target = $region5
    $region4: #{tpu_custom_call.1} parent=1 // pred_region
      %s17 = sadd.s32 0, 0
      %s18 = sld [smem:[#allocation3 + $0x1]]
      %p19 = scmp.lt.s32.totalorder %s17, %s18
      %s20 = scalar_select %p19, %s17, %s18
      %s21 = smul.u32 2, %s20
      %s23 = ssub.s32 256, 256
      %24 = vsyncadd [#allocation5], %s23
      %s25 = smul.addr %s21, 128
      %s26 = scalar_lea.hbm %s1, %s25
      %s27 = sshll.u32 [#allocation4], 4
      %s28 = int_to_ptr.vmem [resolvable:$true] %s27
      %33 = dma.hbm_to_vmem [thread:$0]  %s26, 256, %s28, [#allocation5], 128, 128, 8
    $region5: #{tpu_custom_call.1} parent=1 // pred_fallthru
      _
    // Predicated region
    $region6: #{tpu_custom_call.1} parent=1 // pred_check
      _
    $region7: #{tpu_custom_call.1} parent=1 // pred_check_branch
      %35 = sbr.rel (0) target = $region9
    $region8: #{tpu_custom_call.1} parent=1 // pred_region
      %s36 = sadd.s32 0, 0
      %s37 = sld [smem:[#allocation3 + $0x1]]
      %p38 = scmp.lt.s32.totalorder %s36, %s37
      %s39 = scalar_select %p38, %s36, %s37
      %s40 = smul.u32 2, %s39
      %s42 = ssub.s32 256, 256
      %43 = vsyncadd [#allocation8], %s42
      %s44 = smul.addr %s40, 128
      %s45 = scalar_lea.hbm %s2, %s44
      %s46 = sshll.u32 [#allocation7], 4
      %s47 = int_to_ptr.vmem [resolvable:$true] %s46
      %52 = dma.hbm_to_vmem [thread:$0]  %s45, 256, %s47, [#allocation8], 128, 128, 8
    $region9: #{tpu_custom_call.1} parent=1 // pred_fallthru
      _
    // Predicated region
    $region10: #{tpu_custom_call.1} parent=1 // pred_check
      _
    $region11: #{tpu_custom_call.1} parent=1 // pred_check_branch
      %54 = sbr.rel (0) target = $region13
    $region12: #{tpu_custom_call.1} parent=1 // pred_region
      %55 = dma.done [#allocation5], 256
    $region13: #{tpu_custom_call.1} parent=1 // pred_fallthru
      _
    // Predicated region
    $region14: #{tpu_custom_call.1} parent=1 // pred_check
      _
    $region15: #{tpu_custom_call.1} parent=1 // pred_check_branch
      %57 = sbr.rel (0) target = $region17
    $region16: #{tpu_custom_call.1} parent=1 // pred_region
      %58 = dma.done [#allocation8], 256
    $region17: #{tpu_custom_call.1} parent=1 // pred_fallthru
      _
    %s59 = sadd.s32 0, 0
    %s60 = sld [smem:[#allocation3 + $0x1]]
    %p61 = scmp.lt.s32.totalorder %s59, %s60
    %s62 = scalar_select %p61, %s59, %s60
    %s63 = smul.u32 2, %s62
    %s64 = sadd.s32 0, 0
    %s65 = sld [smem:[#allocation3 + $0x1]]
    %p66 = scmp.lt.s32.totalorder %s64, %s65
    %s67 = scalar_select %p66, %s64, %s65
    %s68 = smul.u32 2, %s67
    %p69 = scmp.eq.s32.totalorder 0, 0
    // Predicated region
    $region18: #{tpu_custom_call.1} parent=1 // pred_check
      %p70 = pneg %p69
    $region19: #{tpu_custom_call.1} parent=1 // pred_check_branch
      %72 = sbr.rel (%p70) target = $region21
    $region20: #{tpu_custom_call.1} parent=1 // pred_region
      %73 = vst [vmem:[#allocation9] sm:$0xff] 0.0
    $region21: #{tpu_custom_call.1} parent=1 // pred_fallthru
      _
    %s74 = sadd.s32 0, 0
    %s75 = sld [smem:[#allocation3]]
    %s76 = sadd.s32 %s74, 1
    %s77 = smul.u32 %s76, 16
    %p78 = scmp.le.s32.totalorder %s77, %s75
    // Predicated region
    $region22: #{tpu_custom_call.1} parent=1 // pred_check
      %p79 = pneg %p78
    $region23: #{tpu_custom_call.1} parent=1 // pred_check_branch
      %81 = sbr.rel (%p79) target = $region25
    $region24: #{tpu_custom_call.1} parent=1 // pred_region
      %v82 = vld [vmem:[#allocation9] sm:$0xff]
      %v83 = vld [vmem:[#allocation4] sm:$0xff]
      %v84 = vld [vmem:[#allocation4 + $0x8] sm:$0xff]
      %v85 = vld [vmem:[#allocation7] sm:$0xff]
      %v86 = vld [vmem:[#allocation7 + $0x8] sm:$0xff]
      %v87 = vlog2.pop %v83
      %v88 = vmul.f32 %v87, 0.6931472
      %v89 = vlog2.pop %v84
      %v90 = vmul.f32 %v89, 0.6931472
      %v91 = vmax.f32 %v88, -100.0
      %v92 = vmax.f32 %v90, -100.0
      %v93 = vsub.f32 1.0, %v83
      %v94 = vsub.f32 1.0, %v84
      %v95 = vlog2.pop %v93
      %v96 = vmul.f32 %v95, 0.6931472
      %v97 = vlog2.pop %v94
      %v98 = vmul.f32 %v97, 0.6931472
      %v99 = vmax.f32 %v96, -100.0
      %v100 = vmax.f32 %v98, -100.0
      %v101 = vsub.f32 %v91, %v99
      %v102 = vsub.f32 %v92, %v100
      %v103 = vmul.f32 %v85, %v101
      %v104 = vmul.f32 %v86, %v102
      %v105 = vadd.f32 %v99, %v103
      %v106 = vadd.f32 %v100, %v104
      %v107 = vadd.f32 %v105, %v106
      %v108 = vadd.f32 %v107, 0.0
      %v109 = vadd.f32 %v82, %v108
      %110 = vst [vmem:[#allocation9] sm:$0xff] %v109
    $region25: #{tpu_custom_call.1} parent=1 // pred_fallthru
      _
    %p111 = scmp.gt.s32.totalorder %s77, %s75
    // Predicated region
    $region26: #{tpu_custom_call.1} parent=1 // pred_check
      %p112 = pneg %p111
    $region27: #{tpu_custom_call.1} parent=1 // pred_check_branch
      %114 = sbr.rel (%p112) target = $region29
    $region28: #{tpu_custom_call.1} parent=1 // pred_region
      %v115 = vld [vmem:[#allocation9] sm:$0xff]
      %v116 = vld [vmem:[#allocation4] sm:$0xff]
      %v117 = vld [vmem:[#allocation4 + $0x8] sm:$0xff]
      %v118 = vld [vmem:[#allocation7] sm:$0xff]
      %v119 = vld [vmem:[#allocation7 + $0x8] sm:$0xff]
      %v120 = vlog2.pop %v116
      %v121 = vmul.f32 %v120, 0.6931472
      %v122 = vlog2.pop %v117
      %v123 = vmul.f32 %v122, 0.6931472
      %v124 = vmax.f32 %v121, -100.0
      %v125 = vmax.f32 %v123, -100.0
      %v126 = vsub.f32 1.0, %v116
      %v127 = vsub.f32 1.0, %v117
      %v128 = vlog2.pop %v126
      %v129 = vmul.f32 %v128, 0.6931472
      %v130 = vlog2.pop %v127
      %v131 = vmul.f32 %v130, 0.6931472
      %v132 = vmax.f32 %v129, -100.0
      %v133 = vmax.f32 %v131, -100.0
      %v134 = vsub.f32 %v124, %v132
      %v135 = vsub.f32 %v125, %v133
      %v136 = vmul.f32 %v118, %v134
      %v137 = vmul.f32 %v119, %v135
      %v138 = vadd.f32 %v132, %v136
      %v139 = vadd.f32 %v133, %v137
      %s140 = smul.u32 %s74, 16
      %s141 = sadd.s32 %s140, 0
      %v142 = vlaneseq
      %v143 = vshrl.u32 %v142, 7
      %v144 = vadd.s32 %v143, 8
      %v145 = vstv %s141
      %v146 = vadd.s32 %v145, %v143
      %v147 = vadd.s32 %v145, %v144
      %v148 = vstv %s75
      %vm149 = vcmp.lt.s32.totalorder %v146, %v148
      %vm150 = vcmp.lt.s32.totalorder %v147, %v148
      %v151 = vsel %vm149, %v138, 0.0
      %v152 = vsel %vm150, %v139, 0.0
      %v153 = vadd.f32 %v151, %v152
      %v154 = vadd.f32 %v153, 0.0
      %v155 = vadd.f32 %v115, %v154
      %156 = vst [vmem:[#allocation9] sm:$0xff] %v155
    $region29: #{tpu_custom_call.1} parent=1 // pred_fallthru
      _
    // Predicated region
    $region30: #{tpu_custom_call.1} parent=1 // pred_check
      _
    $region31: #{tpu_custom_call.1} parent=1 // pred_check_branch
      %158 = sbr.rel (0) target = $region33
    $region32: #{tpu_custom_call.1} parent=1 // pred_region
      %s160 = ssub.s32 128, 128
      %161 = vsyncadd [#allocation6], %s160
      %s163 = sshll.u32 [#allocation9], 4
      %s164 = int_to_ptr.vmem [resolvable:$true] %s163
      %166 = dma.vmem_to_hbm [thread:$0]  %s164, 128, %s3, [#allocation6]
    $region33: #{tpu_custom_call.1} parent=1 // pred_fallthru
      _
    // Predicated region
    $region34: #{tpu_custom_call.1} parent=1 // pred_check
      _
    $region35: #{tpu_custom_call.1} parent=1 // pred_check_branch
      %168 = sbr.rel (0) target = $region37
    $region36: #{tpu_custom_call.1} parent=1 // pred_region
      %169 = dma.done [#allocation6], 128
    $region37: #{tpu_custom_call.1} parent=1 // pred_fallthru
      _
    %170 = vsyncpa [#allocation5], 1
    %171 = vsyncpa [#allocation8], 1
    %172 = vsyncpa [#allocation6], 1

</llo_original>
